<compile_context>
chip_gen: v6e
topology: v6e:2x2x1
jax: 0.10.0
libtpu: 0.0.40
codegen_flags: <defaults>
</compile_context>

<pallas_src>
import jax
import jax.numpy as jnp
from jax.experimental import pallas as pl
from jax.experimental.pallas import tpu as pltpu


# ----------------------------------------------------------------------------
# Fused single-pass kernel: A resident in VMEM, whole forward in one call.
# ----------------------------------------------------------------------------
def gcn_fused_kernel(a_ref, x_ref, wl1_ref, wr1_ref, b1_ref, wlr2_ref, bl2_ref,
                     wfc1_ref, bfc1_ref, wfc2t_ref, bfc2_ref, out_ref):
    a = a_ref[...]                                                   # [N, N] bf16
    x = x_ref[...]                                                   # [N, Cin] bf16
    # SAGEConv1: mean aggregation (bf16 MXU, f32 accumulate) + lin_l / lin_r.
    agg = jnp.dot(a, x, preferred_element_type=jnp.float32)         # [N, Cin]
    h1 = jnp.maximum(
        jnp.dot(agg, wl1_ref[...], preferred_element_type=jnp.float32)
        + jnp.dot(x.astype(jnp.float32), wr1_ref[...],
                  preferred_element_type=jnp.float32)
        + b1_ref[...], 0.0)                                          # [N, H1]
    # Dropout(0.8): identity in eval mode.
    # SAGEConv2 re-associated: A @ (h1 @ wl2) + h1 @ wr2 + bl2  (N*N*1 matmul).
    m = jnp.dot(h1, wlr2_ref[...], preferred_element_type=jnp.float32)  # [N, 2]
    agg2 = jnp.dot(a, m[:, 0:1].astype(a.dtype),
                   preferred_element_type=jnp.float32)               # [N, 1]
    h2 = jnp.maximum(agg2 + bl2_ref[...] + m[:, 1:2], 0.0)           # [N, 1]
    # Dropout(0.8): identity.  squeeze + fc1 + fc2: contraction over nodes.
    z = jnp.sum(h2 * wfc1_ref[...], axis=0, keepdims=True) + bfc1_ref[...]
    out_ref[...] = (jnp.sum(z * wfc2t_ref[...], axis=1, keepdims=True)
                    + bfc2_ref[...])


# ----------------------------------------------------------------------------
# Streamed path, pass 1: SAGEConv1 + ReLU, folded with conv2's projections.
# Emits m = h1 @ [wl2 | wr2]  ([N, 2]) so only 8N bytes leave the kernel.
# ----------------------------------------------------------------------------
def sage1_kernel(a_ref, x_full_ref, x_tile_ref, wl1_ref, wr1_ref, b1_ref,
                 wlr2_ref, m_ref):
    agg = jnp.dot(a_ref[...], x_full_ref[...],
                  preferred_element_type=jnp.float32)                # [T, Cin]
    h1 = jnp.maximum(
        jnp.dot(agg, wl1_ref[...], preferred_element_type=jnp.float32)
        + jnp.dot(x_tile_ref[...].astype(jnp.float32), wr1_ref[...],
                  preferred_element_type=jnp.float32)
        + b1_ref[...], 0.0)                                          # [T, H1]
    # Dropout(0.8): identity in eval mode.
    m_ref[...] = jnp.dot(h1, wlr2_ref[...],
                         preferred_element_type=jnp.float32)         # [T, 2]


# ----------------------------------------------------------------------------
# Streamed path, pass 2: re-associated SAGEConv2 + ReLU -> h2 row tile.
# Fully parallel over row tiles (no serial accumulator).
# ----------------------------------------------------------------------------
def sage2_kernel(a_ref, m_full_ref, m_tile_ref, bl2_ref, h2_ref):
    m_l = m_full_ref[...][:, 0:1].astype(a_ref.dtype)                # [N, 1]
    agg = jnp.dot(a_ref[...], m_l, preferred_element_type=jnp.float32)  # [T, 1]
    h2_ref[...] = jnp.maximum(agg + bl2_ref[...] + m_tile_ref[...][:, 1:2], 0.0)
    # Dropout(0.8): identity in eval mode.


# ----------------------------------------------------------------------------
# Streamed path epilogue: squeeze + fc1 + fc2 (contraction over nodes).
# ----------------------------------------------------------------------------
def fc_head_kernel(h2_ref, wfc1_ref, bfc1_ref, wfc2t_ref, bfc2_ref, out_ref):
    z = jnp.sum(h2_ref[...] * wfc1_ref[...], axis=0, keepdims=True) + bfc1_ref[...]
    out_ref[...] = (jnp.sum(z * wfc2t_ref[...], axis=1, keepdims=True)
                    + bfc2_ref[...])


# ----------------------------------------------------------------------------
# Host-side helpers
# ----------------------------------------------------------------------------
def _round_up(v, m):
    return (v + m - 1) // m * m


def _vmem_capacity_bytes(default=64 << 20):
    """Generation-aware VMEM capacity (128 MiB v5e/v6e, 64 MiB v7x)."""
    try:
        cap = getattr(pltpu.get_tpu_info(), "vmem_capacity_bytes", None)
        return int(cap) if cap else default
    except Exception:
        return default


def _padded_vmem_bytes(rows, cols, elsize):
    """VMEM footprint incl. (sublane, 128-lane) padding of thin operands."""
    sub = 8 * (4 // max(elsize, 1)) if elsize < 4 else 8
    return _round_up(max(rows, 1), sub) * _round_up(max(cols, 1), 128) * elsize


def _fused_vmem_bytes(n, cin, h1dim, h2dim, elsize):
    total = _padded_vmem_bytes(n, n, elsize)          # A resident
    total += _padded_vmem_bytes(n, cin, elsize)       # x
    total += _padded_vmem_bytes(n, h2dim, 4)          # wfc1
    total += 3 * _padded_vmem_bytes(n, h1dim, 4)      # agg / h1 / m / h2 temps
    return int(total * 1.25) + (1 << 20)


def choose_tile_m(n, elsize, vmem_cap, resident_bytes, max_tile=2048):
    """Largest row tile whose double-buffered [tile, N] A slab fits the
    generation-aware budget (~3/8 of VMEM) after resident operands."""
    budget = (vmem_cap * 3) // 8 - resident_bytes
    budget = max(budget, 2 * 16 * n * elsize)         # always allow tile of 16
    t = budget // (2 * n * elsize)
    t = int(min(t, max_tile, _round_up(n, 16)))
    return max(16, (t // 16) * 16)


def gcn_forward(a, x, params, *, mode="auto", tile_m=None,
                compute_dtype=jnp.bfloat16):
    (wl1, bl1, wr1, wl2, bl2, wr2, wfc1, bfc1, wfc2, bfc2) = params
    n, cin = x.shape
    h1dim = wl1.shape[1]
    h2dim = wfc1.shape[1]
    wlr2 = jnp.concatenate([wl2, wr2], axis=1)        # [H1, 2]  packed conv2
    wfc2t = wfc2.T                                    # [1, H2]

    a_c = a.astype(compute_dtype)                     # bf16 A: half HBM traffic
    x_c = x.astype(compute_dtype)
    el = jnp.dtype(compute_dtype).itemsize

    cap = _vmem_capacity_bytes()
    vmem_limit = min((cap * 3) // 4, 112 << 20)       # 96 MiB v5e/v6e, 48 MiB v7x

    if mode == "auto":
        mode = ("fused"
                if _fused_vmem_bytes(n, cin, h1dim, h2dim, el) <= cap // 2
                else "streamed")

    if mode == "fused":
        # A read from HBM exactly once, kept resident; one kernel launch.
        out = pl.pallas_call(
            gcn_fused_kernel,
            out_shape=jax.ShapeDtypeStruct((1, 1), jnp.float32),
            compiler_params=pltpu.CompilerParams(vmem_limit_bytes=vmem_limit),
        )(a_c, x_c, wl1, wr1, bl1, wlr2, bl2, wfc1, bfc1, wfc2t, bfc2)
        return out[0, 0]

    # ---------------- streamed path (A row-tiled, read twice) ----------------
    resident = (_padded_vmem_bytes(n, cin, el)         # x resident (pass 1)
                + _padded_vmem_bytes(n, 2, 4)          # m resident (pass 2)
                + (2 << 20))                           # weights + per-tile temps
    if tile_m is None:
        tile_m = choose_tile_m(n, el, cap, resident)
    tile_m = max(16, (int(tile_m) // 16) * 16)

    n_pad = _round_up(n, tile_m)
    if n_pad != n:
        # Padded rows/cols of A are zero, padded rows of x are zero; padded h2
        # rows are dropped before the fc head, so padding never leaks.
        a_c = jnp.pad(a_c, ((0, n_pad - n), (0, n_pad - n)))
        x_c = jnp.pad(x_c, ((0, n_pad - n), (0, 0)))
    num_tiles = n_pad // tile_m

    # Pass 1 over A: conv1 + ReLU + folded conv2 projections -> m [N, 2].
    m = pl.pallas_call(
        sage1_kernel,
        out_shape=jax.ShapeDtypeStruct((n_pad, 2), jnp.float32),
        grid=(num_tiles,),
        in_specs=[
            pl.BlockSpec((tile_m, n_pad), lambda i: (i, 0)),   # A row tile (streamed)
            pl.BlockSpec((n_pad, cin), lambda i: (0, 0)),      # x (resident)
            pl.BlockSpec((tile_m, cin), lambda i: (i, 0)),     # x row tile
            pl.BlockSpec((cin, h1dim), lambda i: (0, 0)),      # wl1
            pl.BlockSpec((cin, h1dim), lambda i: (0, 0)),      # wr1
            pl.BlockSpec((1, h1dim), lambda i: (0, 0)),        # bl1
            pl.BlockSpec((h1dim, 2), lambda i: (0, 0)),        # [wl2 | wr2]
        ],
        out_specs=pl.BlockSpec((tile_m, 2), lambda i: (i, 0)),
        compiler_params=pltpu.CompilerParams(
            dimension_semantics=("parallel",),
            vmem_limit_bytes=vmem_limit),
    )(a_c, x_c, x_c, wl1, wr1, bl1, wlr2)

    # Pass 2 over A: re-associated conv2 + ReLU -> h2 [N, 1] (fully parallel).
    h2 = pl.pallas_call(
        sage2_kernel,
        out_shape=jax.ShapeDtypeStruct((n_pad, 1), jnp.float32),
        grid=(num_tiles,),
        in_specs=[
            pl.BlockSpec((tile_m, n_pad), lambda i: (i, 0)),   # A row tile (streamed)
            pl.BlockSpec((n_pad, 2), lambda i: (0, 0)),        # m (resident)
            pl.BlockSpec((tile_m, 2), lambda i: (i, 0)),       # m row tile
            pl.BlockSpec((1, 1), lambda i: (0, 0)),            # bl2
        ],
        out_specs=pl.BlockSpec((tile_m, 1), lambda i: (i, 0)),
        compiler_params=pltpu.CompilerParams(
            dimension_semantics=("parallel",),
            vmem_limit_bytes=vmem_limit),
    )(a_c, m, m, bl2)

    # Tiny epilogue: squeeze + fc1 + fc2 on the un-padded node axis.
    out = pl.pallas_call(
        fc_head_kernel,
        out_shape=jax.ShapeDtypeStruct((1, 1), jnp.float32),
        compiler_params=pltpu.CompilerParams(vmem_limit_bytes=vmem_limit),
    )(h2[:n], wfc1, bfc1, wfc2t, bfc2)

    # final torch.squeeze(prediction) -> 0-d scalar
    return out[0, 0]


def build_mean_adjacency(edge_index, num_nodes):
    """Dense row-normalized adjacency: A[i, j] = 1/in_deg(i) for edge j -> i."""
    src = edge_index[0]
    dst = edge_index[1]
    a = jnp.zeros((num_nodes, num_nodes), jnp.float32)
    a = a.at[dst, src].add(1.0)
    deg = jnp.sum(a, axis=1, keepdims=True)
    return a / jnp.maximum(deg, 1.0)


def init_params(key, n_nodes, in_channels, gnn_hidden, last_hidden):
    ks = jax.random.split(key, 8)
    scale = 0.1
    # SAGEConv1 (lin_l has bias, lin_r no bias); weights stored as [in, out].
    wl1 = scale * jax.random.normal(ks[0], (in_channels, gnn_hidden), jnp.float32)
    bl1 = jnp.zeros((1, gnn_hidden), jnp.float32)
    wr1 = scale * jax.random.normal(ks[1], (in_channels, gnn_hidden), jnp.float32)
    # SAGEConv2 -> 1 channel
    wl2 = scale * jax.random.normal(ks[2], (gnn_hidden, 1), jnp.float32)
    bl2 = jnp.zeros((1, 1), jnp.float32)
    wr2 = scale * jax.random.normal(ks[3], (gnn_hidden, 1), jnp.float32)
    # fc1 = LazyLinear(last_hidden): in_features = N (squeezed per-node vector)
    wfc1 = scale * jax.random.normal(ks[4], (n_nodes, last_hidden), jnp.float32)
    bfc1 = scale * jax.random.normal(ks[5], (1, last_hidden), jnp.float32)
    # fc2 = Linear(last_hidden, 1)
    wfc2 = scale * jax.random.normal(ks[6], (last_hidden, 1), jnp.float32)
    bfc2 = scale * jax.random.normal(ks[7], (1, 1), jnp.float32)
    return (wl1, bl1, wr1, wl2, bl2, wr2, wfc1, bfc1, wfc2, bfc2)


def reference_forward(a, x, params):
    (wl1, bl1, wr1, wl2, bl2, wr2, wfc1, bfc1, wfc2, bfc2) = params
    h1 = jnp.maximum(a @ x @ wl1 + bl1 + x @ wr1, 0.0)
    h2 = jnp.maximum(a @ h1 @ wl2 + bl2 + h1 @ wr2, 0.0)
    s = h2.T                      # [1, N]  (torch.squeeze(x, 1) -> fc over N feats)
    z = s @ wfc1 + bfc1
    p = z @ wfc2 + bfc2
    return p[0, 0]


if __name__ == "__main__":
    N = 128           # number of graph nodes
    IN_CH = 4         # in_channels
    H1 = 32           # gnn_layer_hidden
    H2 = 8            # last_layer_hidden
    E = 512           # number of edges

    key = jax.random.PRNGKey(0)
    k_x, k_e, k_p = jax.random.split(key, 3)

    x = jax.random.normal(k_x, (N, IN_CH), jnp.float32)
    edge_index = jax.random.randint(k_e, (2, E), 0, N, jnp.int32)
    a = build_mean_adjacency(edge_index, N)
    params = init_params(k_p, N, IN_CH, H1, H2)

    # Reference evaluated on the same bf16-quantized A / x the kernels consume.
    a_q = a.astype(jnp.bfloat16).astype(jnp.float32)
    x_q = x.astype(jnp.bfloat16).astype(jnp.float32)
    ref = reference_forward(a_q, x_q, params)

    # Fused single-pass path (auto-selected: N=128 working set fits VMEM).
    pred_fused = jax.block_until_ready(gcn_forward(a, x, params, mode="auto"))
    # Streamed two-pass path (exercise the row-tile grid, exact divisor).
    pred_str = jax.block_until_ready(
        gcn_forward(a, x, params, mode="streamed", tile_m=64))
    # Streamed path with a non-divisor tile (exercises row padding, N -> 144).
    pred_pad = jax.block_until_ready(
        gcn_forward(a, x, params, mode="streamed", tile_m=48))

    assert pred_fused.shape == ()  # final torch.squeeze -> scalar
    for p in (pred_fused, pred_str, pred_pad):
        assert jnp.allclose(p, ref, rtol=5e-2, atol=1e-2), (p, ref)
    assert jnp.allclose(pred_fused, pred_str, rtol=1e-3, atol=1e-3)
    assert jnp.allclose(pred_fused, pred_pad, rtol=1e-3, atol=1e-3)
    print("KERNEL_OK")
</pallas_src>

<mosaic_0001>
module attributes {stable_mosaic.version = 11 : i64} {
  func.func @gcn_fused_kernel(%arg0: memref<128x128xbf16, #tpu.memory_space<vmem>>, %arg1: memref<128x4xbf16, #tpu.memory_space<vmem>>, %arg2: memref<4x32xf32, #tpu.memory_space<vmem>>, %arg3: memref<4x32xf32, #tpu.memory_space<vmem>>, %arg4: memref<1x32xf32, #tpu.memory_space<vmem>>, %arg5: memref<32x2xf32, #tpu.memory_space<vmem>>, %arg6: memref<1x1xf32, #tpu.memory_space<vmem>>, %arg7: memref<128x8xf32, #tpu.memory_space<vmem>>, %arg8: memref<1x8xf32, #tpu.memory_space<vmem>>, %arg9: memref<1x8xf32, #tpu.memory_space<vmem>>, %arg10: memref<1x1xf32, #tpu.memory_space<vmem>>, %arg11: memref<1x1xf32, #tpu.memory_space<vmem>>) attributes {dimension_semantics = [], scalar_prefetch = 0 : i64, scratch_operands = 0 : i64, tpu.core_type = #tpu.core_type<tc>} {
    %c0 = arith.constant 0 : index
    %c0_0 = arith.constant 0 : index
    %0 = vector.load %arg0[%c0, %c0_0] : memref<128x128xbf16, #tpu.memory_space<vmem>>, vector<128x128xbf16>
    %c0_1 = arith.constant 0 : index
    %c0_2 = arith.constant 0 : index
    %1 = vector.load %arg1[%c0_1, %c0_2] : memref<128x4xbf16, #tpu.memory_space<vmem>>, vector<128x4xbf16>
    %cst = arith.constant dense<0.000000e+00> : vector<128x4xf32>
    %2 = tpu.matmul %0, %1, %cst {dimension_numbers = #tpu.dot_dimension_numbers<[1], [0], [0], [1], [0, 0, 1, 1], [], []>} : vector<128x128xbf16>, vector<128x4xbf16>, vector<128x4xf32> -> vector<128x4xf32>
    %c0_3 = arith.constant 0 : index
    %c0_4 = arith.constant 0 : index
    %3 = vector.load %arg2[%c0_3, %c0_4] : memref<4x32xf32, #tpu.memory_space<vmem>>, vector<4x32xf32>
    %cst_5 = arith.constant dense<0.000000e+00> : vector<128x32xf32>
    %4 = tpu.matmul %2, %3, %cst_5 {dimension_numbers = #tpu.dot_dimension_numbers<[1], [0], [0], [1], [0, 0, 1, 1], [], []>} : vector<128x4xf32>, vector<4x32xf32>, vector<128x32xf32> -> vector<128x32xf32>
    %5 = arith.extf %1 : vector<128x4xbf16> to vector<128x4xf32>
    %c0_6 = arith.constant 0 : index
    %c0_7 = arith.constant 0 : index
    %6 = vector.load %arg3[%c0_6, %c0_7] : memref<4x32xf32, #tpu.memory_space<vmem>>, vector<4x32xf32>
    %cst_8 = arith.constant dense<0.000000e+00> : vector<128x32xf32>
    %7 = tpu.matmul %5, %6, %cst_8 {dimension_numbers = #tpu.dot_dimension_numbers<[1], [0], [0], [1], [0, 0, 1, 1], [], []>} : vector<128x4xf32>, vector<4x32xf32>, vector<128x32xf32> -> vector<128x32xf32>
    %8 = arith.addf %4, %7 : vector<128x32xf32>
    %c0_9 = arith.constant 0 : index
    %c0_10 = arith.constant 0 : index
    %9 = vector.load %arg4[%c0_9, %c0_10] : memref<1x32xf32, #tpu.memory_space<vmem>>, vector<1x32xf32>
    %10 = vector.broadcast %9 : vector<1x32xf32> to vector<128x32xf32>
    %11 = arith.addf %8, %10 : vector<128x32xf32>
    %cst_11 = arith.constant 0.000000e+00 : f32
    %12 = vector.broadcast %cst_11 : f32 to vector<128x32xf32>
    %13 = arith.maximumf %11, %12 : vector<128x32xf32>
    %c0_12 = arith.constant 0 : index
    %c0_13 = arith.constant 0 : index
    %14 = vector.load %arg5[%c0_12, %c0_13] : memref<32x2xf32, #tpu.memory_space<vmem>>, vector<32x2xf32>
    %cst_14 = arith.constant dense<0.000000e+00> : vector<128x2xf32>
    %15 = tpu.matmul %13, %14, %cst_14 {dimension_numbers = #tpu.dot_dimension_numbers<[1], [0], [0], [1], [0, 0, 1, 1], [], []>} : vector<128x32xf32>, vector<32x2xf32>, vector<128x2xf32> -> vector<128x2xf32>
    %16 = vector.extract_strided_slice %15 {offsets = [0, 0], sizes = [128, 1], strides = [1, 1]} : vector<128x2xf32> to vector<128x1xf32>
    %17 = arith.truncf %16 : vector<128x1xf32> to vector<128x1xbf16>
    %cst_15 = arith.constant dense<0.000000e+00> : vector<128x1xf32>
    %18 = tpu.matmul %0, %17, %cst_15 {dimension_numbers = #tpu.dot_dimension_numbers<[1], [0], [0], [1], [0, 0, 1, 1], [], []>} : vector<128x128xbf16>, vector<128x1xbf16>, vector<128x1xf32> -> vector<128x1xf32>
    %c0_16 = arith.constant 0 : index
    %c0_17 = arith.constant 0 : index
    %19 = vector.load %arg6[%c0_16, %c0_17] : memref<1x1xf32, #tpu.memory_space<vmem>>, vector<1x1xf32>
    %20 = vector.broadcast %19 : vector<1x1xf32> to vector<128x1xf32>
    %21 = arith.addf %18, %20 : vector<128x1xf32>
    %22 = vector.extract_strided_slice %15 {offsets = [0, 1], sizes = [128, 1], strides = [1, 1]} : vector<128x2xf32> to vector<128x1xf32>
    %23 = arith.addf %21, %22 : vector<128x1xf32>
    %cst_18 = arith.constant 0.000000e+00 : f32
    %24 = vector.broadcast %cst_18 : f32 to vector<128x1xf32>
    %25 = arith.maximumf %23, %24 : vector<128x1xf32>
    %c0_19 = arith.constant 0 : index
    %c0_20 = arith.constant 0 : index
    %26 = vector.load %arg7[%c0_19, %c0_20] : memref<128x8xf32, #tpu.memory_space<vmem>>, vector<128x8xf32>
    %27 = vector.broadcast %25 : vector<128x1xf32> to vector<128x8xf32>
    %28 = arith.mulf %27, %26 : vector<128x8xf32>
    %cst_21 = arith.constant dense<0.000000e+00> : vector<8xf32>
    %29 = vector.multi_reduction <add>, %28, %cst_21 [0] : vector<128x8xf32> to vector<8xf32>
    %30 = vector.shape_cast %29 : vector<8xf32> to vector<1x8xf32>
    %c0_22 = arith.constant 0 : index
    %c0_23 = arith.constant 0 : index
    %31 = vector.load %arg8[%c0_22, %c0_23] : memref<1x8xf32, #tpu.memory_space<vmem>>, vector<1x8xf32>
    %32 = arith.addf %30, %31 : vector<1x8xf32>
    %c0_24 = arith.constant 0 : index
    %c0_25 = arith.constant 0 : index
    %33 = vector.load %arg9[%c0_24, %c0_25] : memref<1x8xf32, #tpu.memory_space<vmem>>, vector<1x8xf32>
    %34 = arith.mulf %32, %33 : vector<1x8xf32>
    %cst_26 = arith.constant dense<0.000000e+00> : vector<1xf32>
    %35 = vector.multi_reduction <add>, %34, %cst_26 [1] : vector<1x8xf32> to vector<1xf32>
    %36 = vector.shape_cast %35 : vector<1xf32> to vector<1x1xf32>
    %c0_27 = arith.constant 0 : index
    %c0_28 = arith.constant 0 : index
    %37 = vector.load %arg10[%c0_27, %c0_28] : memref<1x1xf32, #tpu.memory_space<vmem>>, vector<1x1xf32>
    %38 = arith.addf %36, %37 : vector<1x1xf32>
    %c0_29 = arith.constant 0 : index
    %c0_30 = arith.constant 0 : index
    %39 = vector.load %arg11[%c0_29, %c0_30] : memref<1x1xf32, #tpu.memory_space<vmem>>, vector<1x1xf32>
    tpu.vector_store %arg11[%c0_29, %c0_30], %38 {strides = array<i32>} : memref<1x1xf32, #tpu.memory_space<vmem>>, vector<1x1xf32>,
    return
  }
}

</mosaic_0001>

<llo_original>
// kernel: tpu_custom_call.1
$region0: #{tpu_custom_call.1}
  #allocation0 [shape = 'u32[]', space=smem, size = 0x4, offset = 0x4, fixed_abs, tag = 'smem constant byte address 0x4 - core index']
  #allocation1 [shape = 'u32[144,128]{1,0:T(1,128)}', space=vmem, size = 0x12000, scoped, tag = 'internal scratch']
  #allocation2 [shape = 'f32[1,1]{1,0:T(1,128)S(1)}', space=vmem, size = 0x200, scoped, tag = 'scoped memory for tpu_custom_call.1']
  #allocation3 [shape = 'f32[1,1]{1,0:T(1,128)S(1)}', space=vmem, size = 0x200, scoped, tag = 'scoped memory for tpu_custom_call.1']
  %s0 = inlined_call_operand.vmem [shape: bf16[128,128], index: 0, kind: input, shape index: {}]
  %s1 = inlined_call_operand.vmem [shape: bf16[128,4], index: 1, kind: input, shape index: {}]
  %s2 = inlined_call_operand.vmem [shape: f32[4,32], index: 2, kind: input, shape index: {}]
  %s3 = inlined_call_operand.vmem [shape: f32[4,32], index: 3, kind: input, shape index: {}]
  %s4 = inlined_call_operand.vmem [shape: f32[1,32], index: 4, kind: input, shape index: {}]
  %s5 = inlined_call_operand.vmem [shape: f32[32,2], index: 5, kind: input, shape index: {}]
  %s6 = inlined_call_operand.<no memory space> [shape: f32[1,1], index: 6, kind: input, shape index: {}]
  %s7 = inlined_call_operand.vmem [shape: f32[128,8], index: 7, kind: input, shape index: {}]
  %s8 = inlined_call_operand.vmem [shape: f32[1,8], index: 8, kind: input, shape index: {}]
  %s9 = inlined_call_operand.vmem [shape: f32[1,8], index: 9, kind: input, shape index: {}]
  %s10 = inlined_call_operand.<no memory space> [shape: f32[1,1], index: 10, kind: input, shape index: {}]
  %s11 = inlined_call_operand.hbm [shape: f32[1,1], index: 11, kind: output, shape index: {}]
  %s12 = sld [smem:[#allocation0]]
  $region54: #{tpu_custom_call.1} parent=0
    _
  %s14 = ssub.s32 1, %s12
  %s15 = scalar_select 0, %s14, %s12
  %v16 = vstv %s6
  %17 = vst [vmem:[#allocation2] sm:$0x1] %v16
  %v18 = vstv %s10
  %19 = vst [vmem:[#allocation3] sm:$0x1] %v18
  $region1: #{tpu_custom_call.1} parent=0
    #allocation4 [shape = 'u8[512]{0}', space=vmem, size = 0x400, scoped, tag = 'output window, operand 0, single buffered']
    #allocation5 [shape = 's32[1]{0}', space=sflag, size = 0x4, scoped, tag = 'scoped memory for tpu_custom_call.1']
    %20 = vsyncpa [#allocation5], 0
    // Predicated region
    $region2: #{tpu_custom_call.1} parent=1 // pred_check
      _
    $region3: #{tpu_custom_call.1} parent=1 // pred_check_branch
      %22 = sbr.rel (0) target = $region5
    $region4: #{tpu_custom_call.1} parent=1 // pred_region
      _
    $region5: #{tpu_custom_call.1} parent=1 // pred_fallthru
      _
    // Predicated region
    $region6: #{tpu_custom_call.1} parent=1 // pred_check
      _
    $region7: #{tpu_custom_call.1} parent=1 // pred_check_branch
      %24 = sbr.rel (0) target = $region9
    $region8: #{tpu_custom_call.1} parent=1 // pred_region
      _
    $region9: #{tpu_custom_call.1} parent=1 // pred_fallthru
      _
    // Predicated region
    $region10: #{tpu_custom_call.1} parent=1 // pred_check
      _
    $region11: #{tpu_custom_call.1} parent=1 // pred_check_branch
      %26 = sbr.rel (0) target = $region13
    $region12: #{tpu_custom_call.1} parent=1 // pred_region
      _
    $region13: #{tpu_custom_call.1} parent=1 // pred_fallthru
      _
    // Predicated region
    $region14: #{tpu_custom_call.1} parent=1 // pred_check
      _
    $region15: #{tpu_custom_call.1} parent=1 // pred_check_branch
      %28 = sbr.rel (0) target = $region17
    $region16: #{tpu_custom_call.1} parent=1 // pred_region
      _
    $region17: #{tpu_custom_call.1} parent=1 // pred_fallthru
      _
    // Predicated region
    $region18: #{tpu_custom_call.1} parent=1 // pred_check
      _
    $region19: #{tpu_custom_call.1} parent=1 // pred_check_branch
      %30 = sbr.rel (0) target = $region21
    $region20: #{tpu_custom_call.1} parent=1 // pred_region
      _
    $region21: #{tpu_custom_call.1} parent=1 // pred_fallthru
      _
    // Predicated region
    $region22: #{tpu_custom_call.1} parent=1 // pred_check
      _
    $region23: #{tpu_custom_call.1} parent=1 // pred_check_branch
      %32 = sbr.rel (0) target = $region25
    $region24: #{tpu_custom_call.1} parent=1 // pred_region
      _
    $region25: #{tpu_custom_call.1} parent=1 // pred_fallthru
      _
    // Predicated region
    $region26: #{tpu_custom_call.1} parent=1 // pred_check
      _
    $region27: #{tpu_custom_call.1} parent=1 // pred_check_branch
      %34 = sbr.rel (0) target = $region29
    $region28: #{tpu_custom_call.1} parent=1 // pred_region
      _
    $region29: #{tpu_custom_call.1} parent=1 // pred_fallthru
      _
    // Predicated region
    $region30: #{tpu_custom_call.1} parent=1 // pred_check
      _
    $region31: #{tpu_custom_call.1} parent=1 // pred_check_branch
      %36 = sbr.rel (0) target = $region33
    $region32: #{tpu_custom_call.1} parent=1 // pred_region
      _
    $region33: #{tpu_custom_call.1} parent=1 // pred_fallthru
      _
    // Predicated region
    $region34: #{tpu_custom_call.1} parent=1 // pred_check
      _
    $region35: #{tpu_custom_call.1} parent=1 // pred_check_branch
      %38 = sbr.rel (0) target = $region37
    $region36: #{tpu_custom_call.1} parent=1 // pred_region
      _
    $region37: #{tpu_custom_call.1} parent=1 // pred_fallthru
      _
    // Predicated region
    $region38: #{tpu_custom_call.1} parent=1 // pred_check
      _
    $region39: #{tpu_custom_call.1} parent=1 // pred_check_branch
      %40 = sbr.rel (0) target = $region41
    $region40: #{tpu_custom_call.1} parent=1 // pred_region
      _
    $region41: #{tpu_custom_call.1} parent=1 // pred_fallthru
      _
    // Predicated region
    $region42: #{tpu_custom_call.1} parent=1 // pred_check
      _
    $region43: #{tpu_custom_call.1} parent=1 // pred_check_branch
      %42 = sbr.rel (0) target = $region45
    $region44: #{tpu_custom_call.1} parent=1 // pred_region
      _
    $region45: #{tpu_custom_call.1} parent=1 // pred_fallthru
      _
    %v44 = vld [vmem:[%s0] sm:$0xf]
    %v45 = vld [vmem:[%s0 + $0x4] sm:$0xf]
    %v46 = vld [vmem:[%s0 + $0x8] sm:$0xf]
    %v47 = vld [vmem:[%s0 + $0xc] sm:$0xf]
    %v48 = vld [vmem:[%s0 + $0x10] sm:$0xf]
    %v49 = vld [vmem:[%s0 + $0x14] sm:$0xf]
    %v50 = vld [vmem:[%s0 + $0x18] sm:$0xf]
    %v51 = vld [vmem:[%s0 + $0x1c] sm:$0xf]
    %v52 = vld [vmem:[%s0 + $0x20] sm:$0xf]
    %v53 = vld [vmem:[%s0 + $0x24] sm:$0xf]
    %v54 = vld [vmem:[%s0 + $0x28] sm:$0xf]
    %v55 = vld [vmem:[%s0 + $0x2c] sm:$0xf]
    %v56 = vld [vmem:[%s0 + $0x30] sm:$0xf]
    %v57 = vld [vmem:[%s0 + $0x34] sm:$0xf]
    %v58 = vld [vmem:[%s0 + $0x38] sm:$0xf]
    %v59 = vld [vmem:[%s0 + $0x3c] sm:$0xf]
    %v60 = vld [vmem:[%s1] sm:$0xf]
    %v61 = vld [vmem:[%s1 + $0x4] sm:$0xf]
    %v62 = vld [vmem:[%s1 + $0x8] sm:$0xf]
    %v63 = vld [vmem:[%s1 + $0xc] sm:$0xf]
    %v64 = vld [vmem:[%s1 + $0x10] sm:$0xf]
    %v65 = vld [vmem:[%s1 + $0x14] sm:$0xf]
    %v66 = vld [vmem:[%s1 + $0x18] sm:$0xf]
    %v67 = vld [vmem:[%s1 + $0x1c] sm:$0xf]
    %v68 = vld [vmem:[%s1 + $0x20] sm:$0xf]
    %v69 = vld [vmem:[%s1 + $0x24] sm:$0xf]
    %v70 = vld [vmem:[%s1 + $0x28] sm:$0xf]
    %v71 = vld [vmem:[%s1 + $0x2c] sm:$0xf]
    %v72 = vld [vmem:[%s1 + $0x30] sm:$0xf]
    %v73 = vld [vmem:[%s1 + $0x34] sm:$0xf]
    %v74 = vld [vmem:[%s1 + $0x38] sm:$0xf]
    %v75 = vld [vmem:[%s1 + $0x3c] sm:$0xf]
    %v92 = vunpack.c.l.b16 %v44
    %v93 = vunpack.c.l.b16 %v45
    %v94 = vunpack.c.l.b16 %v46
    %v95 = vunpack.c.l.b16 %v47
    %v96 = vunpack.c.l.b16 %v48
    %v97 = vunpack.c.l.b16 %v49
    %v98 = vunpack.c.l.b16 %v50
    %v99 = vunpack.c.l.b16 %v51
    %v100 = vunpack.c.l.b16 %v52
    %v101 = vunpack.c.l.b16 %v53
    %v102 = vunpack.c.l.b16 %v54
    %v103 = vunpack.c.l.b16 %v55
    %v104 = vunpack.c.l.b16 %v56
    %v105 = vunpack.c.l.b16 %v57
    %v106 = vunpack.c.l.b16 %v58
    %v107 = vunpack.c.l.b16 %v59
    %v108 = vpack.c.b16 %v93, %v92
    %v109 = vpack.c.b16 %v95, %v94
    %v110 = vpack.c.b16 %v97, %v96
    %v111 = vpack.c.b16 %v99, %v98
    %v112 = vpack.c.b16 %v101, %v100
    %v113 = vpack.c.b16 %v103, %v102
    %v114 = vpack.c.b16 %v105, %v104
    %v115 = vpack.c.b16 %v107, %v106
    %v140 = vunpack.c.l.b16 %v60
    %v141 = vunpack.c.l.b16 %v61
    %v142 = vunpack.c.l.b16 %v62
    %v143 = vunpack.c.l.b16 %v63
    %v144 = vunpack.c.l.b16 %v64
    %v145 = vunpack.c.l.b16 %v65
    %v146 = vunpack.c.l.b16 %v66
    %v147 = vunpack.c.l.b16 %v67
    %v148 = vunpack.c.l.b16 %v68
    %v149 = vunpack.c.l.b16 %v69
    %v150 = vunpack.c.l.b16 %v70
    %v151 = vunpack.c.l.b16 %v71
    %v152 = vunpack.c.l.b16 %v72
    %v153 = vunpack.c.l.b16 %v73
    %v154 = vunpack.c.l.b16 %v74
    %v155 = vunpack.c.l.b16 %v75
    %v156 = vpack.c.b16 %v141, %v140
    %v157 = vpack.c.b16 %v143, %v142
    %v158 = vpack.c.b16 %v145, %v144
    %v159 = vpack.c.b16 %v147, %v146
    %v160 = vpack.c.b16 %v149, %v148
    %v161 = vpack.c.b16 %v151, %v150
    %v162 = vpack.c.b16 %v153, %v152
    %v163 = vpack.c.b16 %v155, %v154
    %172 = vmatprep.subr.bf16.mxu0 0
    %173 = vmatpush1.bf16.msra.mxu0 %v163
    %174 = vmatprep.subr.bf16.mxu0 0
    %175 = vmatpush1.bf16.msra.mxu0 %v162
    %176 = vmatprep.subr.bf16.mxu0 0
    %177 = vmatpush1.bf16.msra.mxu0 %v161
    %178 = vmatprep.subr.bf16.mxu0 0
    %179 = vmatpush1.bf16.msra.mxu0 %v160
    %180 = vmatprep.subr.bf16.mxu0 0
    %181 = vmatpush1.bf16.msra.mxu0 %v159
    %182 = vmatprep.subr.bf16.mxu0 0
    %183 = vmatpush1.bf16.msra.mxu0 %v158
    %184 = vmatprep.subr.bf16.mxu0 0
    %185 = vmatpush1.bf16.msra.mxu0 %v157
    %186 = vmatprep.subr.bf16.mxu0 0
    %187 = vmatpush1.bf16.msra.mxu0 %v156
    %188 = vmatprep.subr.bf16.mxu0 0
    %189 = vmatpush2.bf16.msra.mxu0 0
    %190 = vmatprep.subr.bf16.mxu0 0
    %191 = vmatpush2.bf16.msra.mxu0 0
    %192 = vmatprep.subr.bf16.mxu0 0
    %193 = vmatpush2.bf16.msra.mxu0 0
    %194 = vmatprep.subr.bf16.mxu0 0
    %195 = vmatpush2.bf16.msra.mxu0 0
    %196 = vmatprep.subr.bf16.mxu0 0
    %197 = vmatpush2.bf16.msra.mxu0 0
    %198 = vmatprep.subr.bf16.mxu0 0
    %199 = vmatpush2.bf16.msra.mxu0 0
    %200 = vmatprep.subr.bf16.mxu0 0
    %201 = vmatpush2.bf16.msra.mxu0 0
    %202 = vmatprep.subr.bf16.mxu0 0
    %203 = vmatpush2.bf16.msra.mxu0 0
    %204 = vmatprep.mubr.bf16.mxu0 0
    %205 = vmatmul.mubr.bf16.gmra.mxu0 %v108
    %v206 = vpop.f32.mrf.mxu0
    %v207 = vadd.f32 0.0, %v206
    %v208 = vpop.f32.mrf.mxu0
    %v209 = vpop.f32.mrf.mxu0
    %v210 = vadd.f32 0.0, %v209
    %v211 = vpop.f32.mrf.mxu0
    %212 = vmatprep.mubr.bf16.mxu0 0
    %213 = vmatmul.mubr.bf16.gmra.mxu0 %v109
    %v214 = vpop.f32.mrf.mxu0
    %v215 = vadd.f32 0.0, %v214
    %v216 = vpop.f32.mrf.mxu0
    %v217 = vpop.f32.mrf.mxu0
    %v218 = vadd.f32 0.0, %v217
    %v219 = vpop.f32.mrf.mxu0
    %220 = vmatprep.mubr.bf16.mxu0 0
    %221 = vmatmul.mubr.bf16.gmra.mxu0 %v110
    %v222 = vpop.f32.mrf.mxu0
    %v223 = vadd.f32 0.0, %v222
    %v224 = vpop.f32.mrf.mxu0
    %v225 = vpop.f32.mrf.mxu0
    %v226 = vadd.f32 0.0, %v225
    %v227 = vpop.f32.mrf.mxu0
    %228 = vmatprep.mubr.bf16.mxu0 0
    %229 = vmatmul.mubr.bf16.gmra.mxu0 %v111
    %v230 = vpop.f32.mrf.mxu0
    %v231 = vadd.f32 0.0, %v230
    %v232 = vpop.f32.mrf.mxu0
    %v233 = vpop.f32.mrf.mxu0
    %v234 = vadd.f32 0.0, %v233
    %v235 = vpop.f32.mrf.mxu0
    %236 = vmatprep.mubr.bf16.mxu0 0
    %237 = vmatmul.mubr.bf16.gmra.mxu0 %v112
    %v238 = vpop.f32.mrf.mxu0
    %v239 = vadd.f32 0.0, %v238
    %v240 = vpop.f32.mrf.mxu0
    %v241 = vpop.f32.mrf.mxu0
    %v242 = vadd.f32 0.0, %v241
    %v243 = vpop.f32.mrf.mxu0
    %244 = vmatprep.mubr.bf16.mxu0 0
    %245 = vmatmul.mubr.bf16.gmra.mxu0 %v113
    %v246 = vpop.f32.mrf.mxu0
    %v247 = vadd.f32 0.0, %v246
    %v248 = vpop.f32.mrf.mxu0
    %v249 = vpop.f32.mrf.mxu0
    %v250 = vadd.f32 0.0, %v249
    %v251 = vpop.f32.mrf.mxu0
    %252 = vmatprep.mubr.bf16.mxu0 0
    %253 = vmatmul.mubr.bf16.gmra.mxu0 %v114
    %v254 = vpop.f32.mrf.mxu0
    %v255 = vadd.f32 0.0, %v254
    %v256 = vpop.f32.mrf.mxu0
    %v257 = vpop.f32.mrf.mxu0
    %v258 = vadd.f32 0.0, %v257
    %v259 = vpop.f32.mrf.mxu0
    %260 = vmatprep.mubr.bf16.mxu0 0
    %261 = vmatmul.mubr.bf16.gmra.mxu0 %v115
    %v262 = vpop.f32.mrf.mxu0
    %v263 = vadd.f32 0.0, %v262
    %v264 = vpop.f32.mrf.mxu0
    %v265 = vpop.f32.mrf.mxu0
    %v266 = vadd.f32 0.0, %v265
    %v267 = vpop.f32.mrf.mxu0
    %268 = vdwg.mxu0
    %v269 = vld [vmem:[%s2] sm:$0xf]
    %v270 = vunpack.c.l.bf16 %v60
    %v271 = vunpack.c.l.bf16 %v61
    %v272 = vunpack.c.l.bf16 %v62
    %v273 = vunpack.c.l.bf16 %v63
    %v274 = vunpack.c.l.bf16 %v64
    %v275 = vunpack.c.l.bf16 %v65
    %v276 = vunpack.c.l.bf16 %v66
    %v277 = vunpack.c.l.bf16 %v67
    %v278 = vunpack.c.l.bf16 %v68
    %v279 = vunpack.c.l.bf16 %v69
    %v280 = vunpack.c.l.bf16 %v70
    %v281 = vunpack.c.l.bf16 %v71
    %v282 = vunpack.c.l.bf16 %v72
    %v283 = vunpack.c.l.bf16 %v73
    %v284 = vunpack.c.l.bf16 %v74
    %v285 = vunpack.c.l.bf16 %v75
    %v286 = vld [vmem:[%s3] sm:$0xf]
    %vm287 = vcmask 31744
    %v289 = vsel %vm287, %v270, 0
    %v292 = vsel %vm287, %v271, 0
    %v295 = vsel %vm287, %v272, 0
    %v298 = vsel %vm287, %v273, 0
    %v301 = vsel %vm287, %v274, 0
    %v304 = vsel %vm287, %v275, 0
    %v307 = vsel %vm287, %v276, 0
    %v310 = vsel %vm287, %v277, 0
    %v313 = vsel %vm287, %v278, 0
    %v316 = vsel %vm287, %v279, 0
    %v319 = vsel %vm287, %v280, 0
    %v322 = vsel %vm287, %v281, 0
    %v325 = vsel %vm287, %v282, 0
    %v328 = vsel %vm287, %v283, 0
    %v331 = vsel %vm287, %v284, 0
    %v334 = vsel %vm287, %v285, 0
    %vm336 = vcmask 1043456
    %v338 = vsel %vm336, %v286, 0
    %340 = vmatprep.subr.mxu0 0.0
    %341 = vmatpush1.msra.mxu0 0.0
    %342 = vmatprep.subr.mxu0 0.0
    %343 = vmatpush1.msra.mxu0 0.0
    %344 = vmatprep.subr.mxu0 0.0
    %345 = vmatpush1.msra.mxu0 0.0
    %346 = vmatprep.subr.mxu0 0.0
    %347 = vmatpush1.msra.mxu0 0.0
    %348 = vmatprep.subr.mxu0 0.0
    %349 = vmatpush1.msra.mxu0 0.0
    %350 = vmatprep.subr.mxu0 0.0
    %351 = vmatpush1.msra.mxu0 0.0
    %352 = vmatprep.subr.mxu0 0.0
    %353 = vmatpush1.msra.mxu0 0.0
    %354 = vmatprep.subr.mxu0 0.0
    %355 = vmatpush1.msra.mxu0 0.0
    %356 = vmatprep.subr.mxu0 0.0
    %357 = vmatpush1.msra.mxu0 0.0
    %358 = vmatprep.subr.mxu0 0.0
    %359 = vmatpush1.msra.mxu0 0.0
    %360 = vmatprep.subr.mxu0 0.0
    %361 = vmatpush1.msra.mxu0 0.0
    %362 = vmatprep.subr.mxu0 0.0
    %363 = vmatpush1.msra.mxu0 0.0
    %364 = vmatprep.subr.mxu0 0.0
    %365 = vmatpush1.msra.mxu0 0.0
    %366 = vmatprep.subr.mxu0 0.0
    %367 = vmatpush1.msra.mxu0 0.0
    %368 = vmatprep.subr.mxu0 0.0
    %369 = vmatpush1.msra.mxu0 0.0
    %370 = vmatprep.subr.mxu0 0.0
    %371 = vmatpush1.msra.mxu0 %v338
    %372 = vmatprep.subr.mxu0 0.0
    %373 = vmatpush2.msra.mxu0 0.0
    %374 = vmatprep.subr.mxu0 0.0
    %375 = vmatpush2.msra.mxu0 0.0
    %376 = vmatprep.subr.mxu0 0.0
    %377 = vmatpush2.msra.mxu0 0.0
    %378 = vmatprep.subr.mxu0 0.0
    %379 = vmatpush2.msra.mxu0 0.0
    %380 = vmatprep.subr.mxu0 0.0
    %381 = vmatpush2.msra.mxu0 0.0
    %382 = vmatprep.subr.mxu0 0.0
    %383 = vmatpush2.msra.mxu0 0.0
    %384 = vmatprep.subr.mxu0 0.0
    %385 = vmatpush2.msra.mxu0 0.0
    %386 = vmatprep.subr.mxu0 0.0
    %387 = vmatpush2.msra.mxu0 0.0
    %388 = vmatprep.subr.mxu0 0.0
    %389 = vmatpush2.msra.mxu0 0.0
    %390 = vmatprep.subr.mxu0 0.0
    %391 = vmatpush2.msra.mxu0 0.0
    %392 = vmatprep.subr.mxu0 0.0
    %393 = vmatpush2.msra.mxu0 0.0
    %394 = vmatprep.subr.mxu0 0.0
    %395 = vmatpush2.msra.mxu0 0.0
    %396 = vmatprep.subr.mxu0 0.0
    %397 = vmatpush2.msra.mxu0 0.0
    %398 = vmatprep.subr.mxu0 0.0
    %399 = vmatpush2.msra.mxu0 0.0
    %400 = vmatprep.subr.mxu0 0.0
    %401 = vmatpush2.msra.mxu0 0.0
    %402 = vmatprep.subr.mxu0 0.0
    %403 = vmatpush2.msra.mxu0 0.0
    %404 = vmatprep.mubr.f32.mxu0 0.0
    %405 = vmatmul.mubr.f32.gmra.mxu0 %v289
    %v406 = vpop.f32.mrf.mxu0
    %v407 = vadd.f32 0.0, %v406
    %v408 = vpop.f32.mrf.mxu0
    %409 = vmatprep.mubr.f32.mxu0 0.0
    %410 = vmatmul.mubr.f32.gmra.mxu0 %v292
    %v411 = vpop.f32.mrf.mxu0
    %v412 = vadd.f32 0.0, %v411
    %v413 = vpop.f32.mrf.mxu0
    %414 = vmatprep.mubr.f32.mxu0 0.0
    %415 = vmatmul.mubr.f32.gmra.mxu0 %v295
    %v416 = vpop.f32.mrf.mxu0
    %v417 = vadd.f32 0.0, %v416
    %v418 = vpop.f32.mrf.mxu0
    %419 = vmatprep.mubr.f32.mxu0 0.0
    %420 = vmatmul.mubr.f32.gmra.mxu0 %v298
    %v421 = vpop.f32.mrf.mxu0
    %v422 = vadd.f32 0.0, %v421
    %v423 = vpop.f32.mrf.mxu0
    %424 = vmatprep.mubr.f32.mxu0 0.0
    %425 = vmatmul.mubr.f32.gmra.mxu0 %v301
    %v426 = vpop.f32.mrf.mxu0
    %v427 = vadd.f32 0.0, %v426
    %v428 = vpop.f32.mrf.mxu0
    %429 = vmatprep.mubr.f32.mxu0 0.0
    %430 = vmatmul.mubr.f32.gmra.mxu0 %v304
    %v431 = vpop.f32.mrf.mxu0
    %v432 = vadd.f32 0.0, %v431
    %v433 = vpop.f32.mrf.mxu0
    %434 = vmatprep.mubr.f32.mxu0 0.0
    %435 = vmatmul.mubr.f32.gmra.mxu0 %v307
    %v436 = vpop.f32.mrf.mxu0
    %v437 = vadd.f32 0.0, %v436
    %v438 = vpop.f32.mrf.mxu0
    %439 = vmatprep.mubr.f32.mxu0 0.0
    %440 = vmatmul.mubr.f32.gmra.mxu0 %v310
    %v441 = vpop.f32.mrf.mxu0
    %v442 = vadd.f32 0.0, %v441
    %v443 = vpop.f32.mrf.mxu0
    %444 = vmatprep.mubr.f32.mxu0 0.0
    %445 = vmatmul.mubr.f32.gmra.mxu0 %v313
    %v446 = vpop.f32.mrf.mxu0
    %v447 = vadd.f32 0.0, %v446
    %v448 = vpop.f32.mrf.mxu0
    %449 = vmatprep.mubr.f32.mxu0 0.0
    %450 = vmatmul.mubr.f32.gmra.mxu0 %v316
    %v451 = vpop.f32.mrf.mxu0
    %v452 = vadd.f32 0.0, %v451
    %v453 = vpop.f32.mrf.mxu0
    %454 = vmatprep.mubr.f32.mxu0 0.0
    %455 = vmatmul.mubr.f32.gmra.mxu0 %v319
    %v456 = vpop.f32.mrf.mxu0
    %v457 = vadd.f32 0.0, %v456
    %v458 = vpop.f32.mrf.mxu0
    %459 = vmatprep.mubr.f32.mxu0 0.0
    %460 = vmatmul.mubr.f32.gmra.mxu0 %v322
    %v461 = vpop.f32.mrf.mxu0
    %v462 = vadd.f32 0.0, %v461
    %v463 = vpop.f32.mrf.mxu0
    %464 = vmatprep.mubr.f32.mxu0 0.0
    %465 = vmatmul.mubr.f32.gmra.mxu0 %v325
    %v466 = vpop.f32.mrf.mxu0
    %v467 = vadd.f32 0.0, %v466
    %v468 = vpop.f32.mrf.mxu0
    %469 = vmatprep.mubr.f32.mxu0 0.0
    %470 = vmatmul.mubr.f32.gmra.mxu0 %v328
    %v471 = vpop.f32.mrf.mxu0
    %v472 = vadd.f32 0.0, %v471
    %v473 = vpop.f32.mrf.mxu0
    %474 = vmatprep.mubr.f32.mxu0 0.0
    %475 = vmatmul.mubr.f32.gmra.mxu0 %v331
    %v476 = vpop.f32.mrf.mxu0
    %v477 = vadd.f32 0.0, %v476
    %v478 = vpop.f32.mrf.mxu0
    %479 = vmatprep.mubr.f32.mxu0 0.0
    %480 = vmatmul.mubr.f32.gmra.mxu0 %v334
    %v481 = vpop.f32.mrf.mxu0
    %v482 = vadd.f32 0.0, %v481
    %v483 = vpop.f32.mrf.mxu0
    %484 = vdwg.mxu0
    %v486 = vsel %vm287, %v207, 0
    %v489 = vsel %vm287, %v210, 0
    %v492 = vsel %vm287, %v215, 0
    %v495 = vsel %vm287, %v218, 0
    %v498 = vsel %vm287, %v223, 0
    %v501 = vsel %vm287, %v226, 0
    %v504 = vsel %vm287, %v231, 0
    %v507 = vsel %vm287, %v234, 0
    %v510 = vsel %vm287, %v239, 0
    %v513 = vsel %vm287, %v242, 0
    %v516 = vsel %vm287, %v247, 0
    %v519 = vsel %vm287, %v250, 0
    %v522 = vsel %vm287, %v255, 0
    %v525 = vsel %vm287, %v258, 0
    %v528 = vsel %vm287, %v263, 0
    %v531 = vsel %vm287, %v266, 0
    %v534 = vsel %vm336, %v269, 0
    %536 = vmatprep.subr.mxu0 0.0
    %537 = vmatpush1.msra.mxu0 0.0
    %538 = vmatprep.subr.mxu0 0.0
    %539 = vmatpush1.msra.mxu0 0.0
    %540 = vmatprep.subr.mxu0 0.0
    %541 = vmatpush1.msra.mxu0 0.0
    %542 = vmatprep.subr.mxu0 0.0
    %543 = vmatpush1.msra.mxu0 0.0
    %544 = vmatprep.subr.mxu0 0.0
    %545 = vmatpush1.msra.mxu0 0.0
    %546 = vmatprep.subr.mxu0 0.0
    %547 = vmatpush1.msra.mxu0 0.0
    %548 = vmatprep.subr.mxu0 0.0
    %549 = vmatpush1.msra.mxu0 0.0
    %550 = vmatprep.subr.mxu0 0.0
    %551 = vmatpush1.msra.mxu0 0.0
    %552 = vmatprep.subr.mxu0 0.0
    %553 = vmatpush1.msra.mxu0 0.0
    %554 = vmatprep.subr.mxu0 0.0
    %555 = vmatpush1.msra.mxu0 0.0
    %556 = vmatprep.subr.mxu0 0.0
    %557 = vmatpush1.msra.mxu0 0.0
    %558 = vmatprep.subr.mxu0 0.0
    %559 = vmatpush1.msra.mxu0 0.0
    %560 = vmatprep.subr.mxu0 0.0
    %561 = vmatpush1.msra.mxu0 0.0
    %562 = vmatprep.subr.mxu0 0.0
    %563 = vmatpush1.msra.mxu0 0.0
    %564 = vmatprep.subr.mxu0 0.0
    %565 = vmatpush1.msra.mxu0 0.0
    %566 = vmatprep.subr.mxu0 0.0
    %567 = vmatpush1.msra.mxu0 %v534
    %568 = vmatprep.subr.mxu0 0.0
    %569 = vmatpush2.msra.mxu0 0.0
    %570 = vmatprep.subr.mxu0 0.0
    %571 = vmatpush2.msra.mxu0 0.0
    %572 = vmatprep.subr.mxu0 0.0
    %573 = vmatpush2.msra.mxu0 0.0
    %574 = vmatprep.subr.mxu0 0.0
    %575 = vmatpush2.msra.mxu0 0.0
    %576 = vmatprep.subr.mxu0 0.0
    %577 = vmatpush2.msra.mxu0 0.0
    %578 = vmatprep.subr.mxu0 0.0
    %579 = vmatpush2.msra.mxu0 0.0
    %580 = vmatprep.subr.mxu0 0.0
    %581 = vmatpush2.msra.mxu0 0.0
    %582 = vmatprep.subr.mxu0 0.0
    %583 = vmatpush2.msra.mxu0 0.0
    %584 = vmatprep.subr.mxu0 0.0
    %585 = vmatpush2.msra.mxu0 0.0
    %586 = vmatprep.subr.mxu0 0.0
    %587 = vmatpush2.msra.mxu0 0.0
    %588 = vmatprep.subr.mxu0 0.0
    %589 = vmatpush2.msra.mxu0 0.0
    %590 = vmatprep.subr.mxu0 0.0
    %591 = vmatpush2.msra.mxu0 0.0
    %592 = vmatprep.subr.mxu0 0.0
    %593 = vmatpush2.msra.mxu0 0.0
    %594 = vmatprep.subr.mxu0 0.0
    %595 = vmatpush2.msra.mxu0 0.0
    %596 = vmatprep.subr.mxu0 0.0
    %597 = vmatpush2.msra.mxu0 0.0
    %598 = vmatprep.subr.mxu0 0.0
    %599 = vmatpush2.msra.mxu0 0.0
    %600 = vmatprep.mubr.f32.mxu0 0.0
    %601 = vmatmul.mubr.f32.gmra.mxu0 %v486
    %v602 = vpop.f32.mrf.mxu0
    %v603 = vadd.f32 %v407, %v602
    %v604 = vpop.f32.mrf.mxu0
    %605 = vmatprep.mubr.f32.mxu0 0.0
    %606 = vmatmul.mubr.f32.gmra.mxu0 %v489
    %v607 = vpop.f32.mrf.mxu0
    %v608 = vadd.f32 %v412, %v607
    %v609 = vpop.f32.mrf.mxu0
    %610 = vmatprep.mubr.f32.mxu0 0.0
    %611 = vmatmul.mubr.f32.gmra.mxu0 %v492
    %v612 = vpop.f32.mrf.mxu0
    %v613 = vadd.f32 %v417, %v612
    %v614 = vpop.f32.mrf.mxu0
    %615 = vmatprep.mubr.f32.mxu0 0.0
    %616 = vmatmul.mubr.f32.gmra.mxu0 %v495
    %v617 = vpop.f32.mrf.mxu0
    %v618 = vadd.f32 %v422, %v617
    %v619 = vpop.f32.mrf.mxu0
    %620 = vmatprep.mubr.f32.mxu0 0.0
    %621 = vmatmul.mubr.f32.gmra.mxu0 %v498
    %v622 = vpop.f32.mrf.mxu0
    %v623 = vadd.f32 %v427, %v622
    %v624 = vpop.f32.mrf.mxu0
    %625 = vmatprep.mubr.f32.mxu0 0.0
    %626 = vmatmul.mubr.f32.gmra.mxu0 %v501
    %v627 = vpop.f32.mrf.mxu0
    %v628 = vadd.f32 %v432, %v627
    %v629 = vpop.f32.mrf.mxu0
    %630 = vmatprep.mubr.f32.mxu0 0.0
    %631 = vmatmul.mubr.f32.gmra.mxu0 %v504
    %v632 = vpop.f32.mrf.mxu0
    %v633 = vadd.f32 %v437, %v632
    %v634 = vpop.f32.mrf.mxu0
    %635 = vmatprep.mubr.f32.mxu0 0.0
    %636 = vmatmul.mubr.f32.gmra.mxu0 %v507
    %v637 = vpop.f32.mrf.mxu0
    %v638 = vadd.f32 %v442, %v637
    %v639 = vpop.f32.mrf.mxu0
    %640 = vmatprep.mubr.f32.mxu0 0.0
    %641 = vmatmul.mubr.f32.gmra.mxu0 %v510
    %v642 = vpop.f32.mrf.mxu0
    %v643 = vadd.f32 %v447, %v642
    %v644 = vpop.f32.mrf.mxu0
    %645 = vmatprep.mubr.f32.mxu0 0.0
    %646 = vmatmul.mubr.f32.gmra.mxu0 %v513
    %v647 = vpop.f32.mrf.mxu0
    %v648 = vadd.f32 %v452, %v647
    %v649 = vpop.f32.mrf.mxu0
    %650 = vmatprep.mubr.f32.mxu0 0.0
    %651 = vmatmul.mubr.f32.gmra.mxu0 %v516
    %v652 = vpop.f32.mrf.mxu0
    %v653 = vadd.f32 %v457, %v652
    %v654 = vpop.f32.mrf.mxu0
    %655 = vmatprep.mubr.f32.mxu0 0.0
    %656 = vmatmul.mubr.f32.gmra.mxu0 %v519
    %v657 = vpop.f32.mrf.mxu0
    %v658 = vadd.f32 %v462, %v657
    %v659 = vpop.f32.mrf.mxu0
    %660 = vmatprep.mubr.f32.mxu0 0.0
    %661 = vmatmul.mubr.f32.gmra.mxu0 %v522
    %v662 = vpop.f32.mrf.mxu0
    %v663 = vadd.f32 %v467, %v662
    %v664 = vpop.f32.mrf.mxu0
    %665 = vmatprep.mubr.f32.mxu0 0.0
    %666 = vmatmul.mubr.f32.gmra.mxu0 %v525
    %v667 = vpop.f32.mrf.mxu0
    %v668 = vadd.f32 %v472, %v667
    %v669 = vpop.f32.mrf.mxu0
    %670 = vmatprep.mubr.f32.mxu0 0.0
    %671 = vmatmul.mubr.f32.gmra.mxu0 %v528
    %v672 = vpop.f32.mrf.mxu0
    %v673 = vadd.f32 %v477, %v672
    %v674 = vpop.f32.mrf.mxu0
    %675 = vmatprep.mubr.f32.mxu0 0.0
    %676 = vmatmul.mubr.f32.gmra.mxu0 %v531
    %v677 = vpop.f32.mrf.mxu0
    %v678 = vadd.f32 %v482, %v677
    %v679 = vpop.f32.mrf.mxu0
    %680 = vdwg.mxu0
    %v681 = vld [vmem:[%s4] sm:$0x1]
    %v683 = vlaneseq
    %v684 = vshrl.u32 %v683, 7
    %v685 = vsub.s32 0, %v684
    %v686 = vrot.slane %v681, %v685
    %v688 = vadd.f32 %v603, %v686
    %v689 = vadd.f32 %v608, %v686
    %v690 = vadd.f32 %v613, %v686
    %v691 = vadd.f32 %v618, %v686
    %v692 = vadd.f32 %v623, %v686
    %v693 = vadd.f32 %v628, %v686
    %v694 = vadd.f32 %v633, %v686
    %v695 = vadd.f32 %v638, %v686
    %v696 = vadd.f32 %v643, %v686
    %v697 = vadd.f32 %v648, %v686
    %v698 = vadd.f32 %v653, %v686
    %v699 = vadd.f32 %v658, %v686
    %v700 = vadd.f32 %v663, %v686
    %v701 = vadd.f32 %v668, %v686
    %v702 = vadd.f32 %v673, %v686
    %v703 = vadd.f32 %v678, %v686
    %v704 = vmax.f32 %v688, 0.0
    %v705 = vmax.f32 %v689, 0.0
    %v706 = vmax.f32 %v690, 0.0
    %v707 = vmax.f32 %v691, 0.0
    %v708 = vmax.f32 %v692, 0.0
    %v709 = vmax.f32 %v693, 0.0
    %v710 = vmax.f32 %v694, 0.0
    %v711 = vmax.f32 %v695, 0.0
    %v712 = vmax.f32 %v696, 0.0
    %v713 = vmax.f32 %v697, 0.0
    %v714 = vmax.f32 %v698, 0.0
    %v715 = vmax.f32 %v699, 0.0
    %v716 = vmax.f32 %v700, 0.0
    %v717 = vmax.f32 %v701, 0.0
    %v718 = vmax.f32 %v702, 0.0
    %v719 = vmax.f32 %v703, 0.0
    %v720 = vld [vmem:[%s5] sm:$0xff]
    %v721 = vld [vmem:[%s5 + $0x8] sm:$0xff]
    %v722 = vld [vmem:[%s5 + $0x10] sm:$0xff]
    %v723 = vld [vmem:[%s5 + $0x18] sm:$0xff]
    %vm724 = vcmask 261120
    %v726 = vsel %vm724, %v704, 0
    %v729 = vsel %vm724, %v705, 0
    %v732 = vsel %vm724, %v706, 0
    %v735 = vsel %vm724, %v707, 0
    %v738 = vsel %vm724, %v708, 0
    %v741 = vsel %vm724, %v709, 0
    %v744 = vsel %vm724, %v710, 0
    %v747 = vsel %vm724, %v711, 0
    %v750 = vsel %vm724, %v712, 0
    %v753 = vsel %vm724, %v713, 0
    %v756 = vsel %vm724, %v714, 0
    %v759 = vsel %vm724, %v715, 0
    %v762 = vsel %vm724, %v716, 0
    %v765 = vsel %vm724, %v717, 0
    %v768 = vsel %vm724, %v718, 0
    %v771 = vsel %vm724, %v719, 0
    %773 = vmatprep.subr.mxu0 0.0
    %774 = vmatpush1.msra.mxu0 0.0
    %775 = vmatprep.subr.mxu0 0.0
    %776 = vmatpush1.msra.mxu0 0.0
    %777 = vmatprep.subr.mxu0 0.0
    %778 = vmatpush1.msra.mxu0 0.0
    %779 = vmatprep.subr.mxu0 0.0
    %780 = vmatpush1.msra.mxu0 0.0
    %781 = vmatprep.subr.mxu0 0.0
    %782 = vmatpush1.msra.mxu0 0.0
    %783 = vmatprep.subr.mxu0 0.0
    %784 = vmatpush1.msra.mxu0 0.0
    %785 = vmatprep.subr.mxu0 0.0
    %786 = vmatpush1.msra.mxu0 0.0
    %787 = vmatprep.subr.mxu0 0.0
    %788 = vmatpush1.msra.mxu0 0.0
    %789 = vmatprep.subr.mxu0 0.0
    %790 = vmatpush1.msra.mxu0 0.0
    %791 = vmatprep.subr.mxu0 0.0
    %792 = vmatpush1.msra.mxu0 0.0
    %793 = vmatprep.subr.mxu0 0.0
    %794 = vmatpush1.msra.mxu0 0.0
    %795 = vmatprep.subr.mxu0 0.0
    %796 = vmatpush1.msra.mxu0 0.0
    %797 = vmatprep.subr.mxu0 0.0
    %798 = vmatpush1.msra.mxu0 %v723
    %799 = vmatprep.subr.mxu0 0.0
    %800 = vmatpush1.msra.mxu0 %v722
    %801 = vmatprep.subr.mxu0 0.0
    %802 = vmatpush1.msra.mxu0 %v721
    %803 = vmatprep.subr.mxu0 0.0
    %804 = vmatpush1.msra.mxu0 %v720
    %805 = vmatprep.subr.mxu0 0.0
    %806 = vmatpush2.msra.mxu0 0.0
    %807 = vmatprep.subr.mxu0 0.0
    %808 = vmatpush2.msra.mxu0 0.0
    %809 = vmatprep.subr.mxu0 0.0
    %810 = vmatpush2.msra.mxu0 0.0
    %811 = vmatprep.subr.mxu0 0.0
    %812 = vmatpush2.msra.mxu0 0.0
    %813 = vmatprep.subr.mxu0 0.0
    %814 = vmatpush2.msra.mxu0 0.0
    %815 = vmatprep.subr.mxu0 0.0
    %816 = vmatpush2.msra.mxu0 0.0
    %817 = vmatprep.subr.mxu0 0.0
    %818 = vmatpush2.msra.mxu0 0.0
    %819 = vmatprep.subr.mxu0 0.0
    %820 = vmatpush2.msra.mxu0 0.0
    %821 = vmatprep.subr.mxu0 0.0
    %822 = vmatpush2.msra.mxu0 0.0
    %823 = vmatprep.subr.mxu0 0.0
    %824 = vmatpush2.msra.mxu0 0.0
    %825 = vmatprep.subr.mxu0 0.0
    %826 = vmatpush2.msra.mxu0 0.0
    %827 = vmatprep.subr.mxu0 0.0
    %828 = vmatpush2.msra.mxu0 0.0
    %829 = vmatprep.subr.mxu0 0.0
    %830 = vmatpush2.msra.mxu0 0.0
    %831 = vmatprep.subr.mxu0 0.0
    %832 = vmatpush2.msra.mxu0 0.0
    %833 = vmatprep.subr.mxu0 0.0
    %834 = vmatpush2.msra.mxu0 0.0
    %835 = vmatprep.subr.mxu0 0.0
    %836 = vmatpush2.msra.mxu0 0.0
    %837 = vmatprep.mubr.f32.mxu0 0.0
    %838 = vmatmul.mubr.f32.gmra.mxu0 %v726
    %v839 = vpop.f32.mrf.mxu0
    %v840 = vadd.f32 0.0, %v839
    %v841 = vpop.f32.mrf.mxu0
    %842 = vmatprep.mubr.f32.mxu0 0.0
    %843 = vmatmul.mubr.f32.gmra.mxu0 %v729
    %v844 = vpop.f32.mrf.mxu0
    %v845 = vadd.f32 0.0, %v844
    %v846 = vpop.f32.mrf.mxu0
    %847 = vmatprep.mubr.f32.mxu0 0.0
    %848 = vmatmul.mubr.f32.gmra.mxu0 %v732
    %v849 = vpop.f32.mrf.mxu0
    %v850 = vadd.f32 0.0, %v849
    %v851 = vpop.f32.mrf.mxu0
    %852 = vmatprep.mubr.f32.mxu0 0.0
    %853 = vmatmul.mubr.f32.gmra.mxu0 %v735
    %v854 = vpop.f32.mrf.mxu0
    %v855 = vadd.f32 0.0, %v854
    %v856 = vpop.f32.mrf.mxu0
    %857 = vmatprep.mubr.f32.mxu0 0.0
    %858 = vmatmul.mubr.f32.gmra.mxu0 %v738
    %v859 = vpop.f32.mrf.mxu0
    %v860 = vadd.f32 0.0, %v859
    %v861 = vpop.f32.mrf.mxu0
    %862 = vmatprep.mubr.f32.mxu0 0.0
    %863 = vmatmul.mubr.f32.gmra.mxu0 %v741
    %v864 = vpop.f32.mrf.mxu0
    %v865 = vadd.f32 0.0, %v864
    %v866 = vpop.f32.mrf.mxu0
    %867 = vmatprep.mubr.f32.mxu0 0.0
    %868 = vmatmul.mubr.f32.gmra.mxu0 %v744
    %v869 = vpop.f32.mrf.mxu0
    %v870 = vadd.f32 0.0, %v869
    %v871 = vpop.f32.mrf.mxu0
    %872 = vmatprep.mubr.f32.mxu0 0.0
    %873 = vmatmul.mubr.f32.gmra.mxu0 %v747
    %v874 = vpop.f32.mrf.mxu0
    %v875 = vadd.f32 0.0, %v874
    %v876 = vpop.f32.mrf.mxu0
    %877 = vmatprep.mubr.f32.mxu0 0.0
    %878 = vmatmul.mubr.f32.gmra.mxu0 %v750
    %v879 = vpop.f32.mrf.mxu0
    %v880 = vadd.f32 0.0, %v879
    %v881 = vpop.f32.mrf.mxu0
    %882 = vmatprep.mubr.f32.mxu0 0.0
    %883 = vmatmul.mubr.f32.gmra.mxu0 %v753
    %v884 = vpop.f32.mrf.mxu0
    %v885 = vadd.f32 0.0, %v884
    %v886 = vpop.f32.mrf.mxu0
    %887 = vmatprep.mubr.f32.mxu0 0.0
    %888 = vmatmul.mubr.f32.gmra.mxu0 %v756
    %v889 = vpop.f32.mrf.mxu0
    %v890 = vadd.f32 0.0, %v889
    %v891 = vpop.f32.mrf.mxu0
    %892 = vmatprep.mubr.f32.mxu0 0.0
    %893 = vmatmul.mubr.f32.gmra.mxu0 %v759
    %v894 = vpop.f32.mrf.mxu0
    %v895 = vadd.f32 0.0, %v894
    %v896 = vpop.f32.mrf.mxu0
    %897 = vmatprep.mubr.f32.mxu0 0.0
    %898 = vmatmul.mubr.f32.gmra.mxu0 %v762
    %v899 = vpop.f32.mrf.mxu0
    %v900 = vadd.f32 0.0, %v899
    %v901 = vpop.f32.mrf.mxu0
    %902 = vmatprep.mubr.f32.mxu0 0.0
    %903 = vmatmul.mubr.f32.gmra.mxu0 %v765
    %v904 = vpop.f32.mrf.mxu0
    %v905 = vadd.f32 0.0, %v904
    %v906 = vpop.f32.mrf.mxu0
    %907 = vmatprep.mubr.f32.mxu0 0.0
    %908 = vmatmul.mubr.f32.gmra.mxu0 %v768
    %v909 = vpop.f32.mrf.mxu0
    %v910 = vadd.f32 0.0, %v909
    %v911 = vpop.f32.mrf.mxu0
    %912 = vmatprep.mubr.f32.mxu0 0.0
    %913 = vmatmul.mubr.f32.gmra.mxu0 %v771
    %v914 = vpop.f32.mrf.mxu0
    %v915 = vadd.f32 0.0, %v914
    %v916 = vpop.f32.mrf.mxu0
    %917 = vdwg.mxu0
    %v918 = vpack.c.bf16 %v845, %v840
    %v919 = vpack.c.bf16 %v855, %v850
    %v920 = vpack.c.bf16 %v865, %v860
    %v921 = vpack.c.bf16 %v875, %v870
    %v922 = vpack.c.bf16 %v885, %v880
    %v923 = vpack.c.bf16 %v895, %v890
    %v924 = vpack.c.bf16 %v905, %v900
    %v925 = vpack.c.bf16 %v915, %v910
    %v926 = vld [vmem:[#allocation2] sm:$0x1]
    %v928 = vlaneseq
    %v929 = vshrl.u32 %v928, 7
    %v930 = vsub.s32 0, %v929
    %v931 = vrot.slane %v926, %v930
    %933 = vmatprep.subr.bf16.mxu0 0
    %934 = vmatpush1.bf16.msra.mxu0 %v925
    %935 = vmatprep.subr.bf16.mxu0 0
    %936 = vmatpush1.bf16.msra.mxu0 %v924
    %937 = vmatprep.subr.bf16.mxu0 0
    %938 = vmatpush1.bf16.msra.mxu0 %v923
    %939 = vmatprep.subr.bf16.mxu0 0
    %940 = vmatpush1.bf16.msra.mxu0 %v922
    %941 = vmatprep.subr.bf16.mxu0 0
    %942 = vmatpush1.bf16.msra.mxu0 %v921
    %943 = vmatprep.subr.bf16.mxu0 0
    %944 = vmatpush1.bf16.msra.mxu0 %v920
    %945 = vmatprep.subr.bf16.mxu0 0
    %946 = vmatpush1.bf16.msra.mxu0 %v919
    %947 = vmatprep.subr.bf16.mxu0 0
    %948 = vmatpush1.bf16.msra.mxu0 %v918
    %949 = vmatprep.subr.bf16.mxu0 0
    %950 = vmatpush2.bf16.msra.mxu0 0
    %951 = vmatprep.subr.bf16.mxu0 0
    %952 = vmatpush2.bf16.msra.mxu0 0
    %953 = vmatprep.subr.bf16.mxu0 0
    %954 = vmatpush2.bf16.msra.mxu0 0
    %955 = vmatprep.subr.bf16.mxu0 0
    %956 = vmatpush2.bf16.msra.mxu0 0
    %957 = vmatprep.subr.bf16.mxu0 0
    %958 = vmatpush2.bf16.msra.mxu0 0
    %959 = vmatprep.subr.bf16.mxu0 0
    %960 = vmatpush2.bf16.msra.mxu0 0
    %961 = vmatprep.subr.bf16.mxu0 0
    %962 = vmatpush2.bf16.msra.mxu0 0
    %963 = vmatprep.subr.bf16.mxu0 0
    %964 = vmatpush2.bf16.msra.mxu0 0
    %965 = vmatprep.mubr.bf16.mxu0 0
    %966 = vmatmul.mubr.bf16.gmra.mxu0 %v108
    %v967 = vpop.f32.mrf.mxu0
    %v968 = vadd.f32 %v931, %v967
    %v969 = vpop.f32.mrf.mxu0
    %v970 = vpop.f32.mrf.mxu0
    %v971 = vadd.f32 %v931, %v970
    %v972 = vpop.f32.mrf.mxu0
    %973 = vmatprep.mubr.bf16.mxu0 0
    %974 = vmatmul.mubr.bf16.gmra.mxu0 %v109
    %v975 = vpop.f32.mrf.mxu0
    %v976 = vadd.f32 %v931, %v975
    %v977 = vpop.f32.mrf.mxu0
    %v978 = vpop.f32.mrf.mxu0
    %v979 = vadd.f32 %v931, %v978
    %v980 = vpop.f32.mrf.mxu0
    %981 = vmatprep.mubr.bf16.mxu0 0
    %982 = vmatmul.mubr.bf16.gmra.mxu0 %v110
    %v983 = vpop.f32.mrf.mxu0
    %v984 = vadd.f32 %v931, %v983
    %v985 = vpop.f32.mrf.mxu0
    %v986 = vpop.f32.mrf.mxu0
    %v987 = vadd.f32 %v931, %v986
    %v988 = vpop.f32.mrf.mxu0
    %989 = vmatprep.mubr.bf16.mxu0 0
    %990 = vmatmul.mubr.bf16.gmra.mxu0 %v111
    %v991 = vpop.f32.mrf.mxu0
    %v992 = vadd.f32 %v931, %v991
    %v993 = vpop.f32.mrf.mxu0
    %v994 = vpop.f32.mrf.mxu0
    %v995 = vadd.f32 %v931, %v994
    %v996 = vpop.f32.mrf.mxu0
    %997 = vmatprep.mubr.bf16.mxu0 0
    %998 = vmatmul.mubr.bf16.gmra.mxu0 %v112
    %v999 = vpop.f32.mrf.mxu0
    %v1000 = vadd.f32 %v931, %v999
    %v1001 = vpop.f32.mrf.mxu0
    %v1002 = vpop.f32.mrf.mxu0
    %v1003 = vadd.f32 %v931, %v1002
    %v1004 = vpop.f32.mrf.mxu0
    %1005 = vmatprep.mubr.bf16.mxu0 0
    %1006 = vmatmul.mubr.bf16.gmra.mxu0 %v113
    %v1007 = vpop.f32.mrf.mxu0
    %v1008 = vadd.f32 %v931, %v1007
    %v1009 = vpop.f32.mrf.mxu0
    %v1010 = vpop.f32.mrf.mxu0
    %v1011 = vadd.f32 %v931, %v1010
    %v1012 = vpop.f32.mrf.mxu0
    %1013 = vmatprep.mubr.bf16.mxu0 0
    %1014 = vmatmul.mubr.bf16.gmra.mxu0 %v114
    %v1015 = vpop.f32.mrf.mxu0
    %v1016 = vadd.f32 %v931, %v1015
    %v1017 = vpop.f32.mrf.mxu0
    %v1018 = vpop.f32.mrf.mxu0
    %v1019 = vadd.f32 %v931, %v1018
    %v1020 = vpop.f32.mrf.mxu0
    %1021 = vmatprep.mubr.bf16.mxu0 0
    %1022 = vmatmul.mubr.bf16.gmra.mxu0 %v115
    %v1023 = vpop.f32.mrf.mxu0
    %v1024 = vadd.f32 %v931, %v1023
    %v1025 = vpop.f32.mrf.mxu0
    %v1026 = vpop.f32.mrf.mxu0
    %v1027 = vadd.f32 %v931, %v1026
    %v1028 = vpop.f32.mrf.mxu0
    %1029 = vdwg.mxu0
    %1046 = vrot.lane.b32.xlu0 %v840, 127
    %v1047 = vpop.permute.xlu0 %1046
    %1048 = vrot.lane.b32.xlu0 %v845, 127
    %v1049 = vpop.permute.xlu0 %1048
    %1050 = vrot.lane.b32.xlu0 %v850, 127
    %v1051 = vpop.permute.xlu0 %1050
    %1052 = vrot.lane.b32.xlu0 %v855, 127
    %v1053 = vpop.permute.xlu0 %1052
    %1054 = vrot.lane.b32.xlu0 %v860, 127
    %v1055 = vpop.permute.xlu0 %1054
    %1056 = vrot.lane.b32.xlu0 %v865, 127
    %v1057 = vpop.permute.xlu0 %1056
    %1058 = vrot.lane.b32.xlu0 %v870, 127
    %v1059 = vpop.permute.xlu0 %1058
    %1060 = vrot.lane.b32.xlu0 %v875, 127
    %v1061 = vpop.permute.xlu0 %1060
    %1062 = vrot.lane.b32.xlu0 %v880, 127
    %v1063 = vpop.permute.xlu0 %1062
    %1064 = vrot.lane.b32.xlu0 %v885, 127
    %v1065 = vpop.permute.xlu0 %1064
    %1066 = vrot.lane.b32.xlu0 %v890, 127
    %v1067 = vpop.permute.xlu0 %1066
    %1068 = vrot.lane.b32.xlu0 %v895, 127
    %v1069 = vpop.permute.xlu0 %1068
    %1070 = vrot.lane.b32.xlu0 %v900, 127
    %v1071 = vpop.permute.xlu0 %1070
    %1072 = vrot.lane.b32.xlu0 %v905, 127
    %v1073 = vpop.permute.xlu0 %1072
    %1074 = vrot.lane.b32.xlu0 %v910, 127
    %v1075 = vpop.permute.xlu0 %1074
    %1076 = vrot.lane.b32.xlu0 %v915, 127
    %v1077 = vpop.permute.xlu0 %1076
    %v1094 = vadd.f32 %v968, %v1047
    %v1095 = vadd.f32 %v971, %v1049
    %v1096 = vadd.f32 %v976, %v1051
    %v1097 = vadd.f32 %v979, %v1053
    %v1098 = vadd.f32 %v984, %v1055
    %v1099 = vadd.f32 %v987, %v1057
    %v1100 = vadd.f32 %v992, %v1059
    %v1101 = vadd.f32 %v995, %v1061
    %v1102 = vadd.f32 %v1000, %v1063
    %v1103 = vadd.f32 %v1003, %v1065
    %v1104 = vadd.f32 %v1008, %v1067
    %v1105 = vadd.f32 %v1011, %v1069
    %v1106 = vadd.f32 %v1016, %v1071
    %v1107 = vadd.f32 %v1019, %v1073
    %v1108 = vadd.f32 %v1024, %v1075
    %v1109 = vadd.f32 %v1027, %v1077
    %v1110 = vmax.f32 %v1094, 0.0
    %v1111 = vmax.f32 %v1095, 0.0
    %v1112 = vmax.f32 %v1096, 0.0
    %v1113 = vmax.f32 %v1097, 0.0
    %v1114 = vmax.f32 %v1098, 0.0
    %v1115 = vmax.f32 %v1099, 0.0
    %v1116 = vmax.f32 %v1100, 0.0
    %v1117 = vmax.f32 %v1101, 0.0
    %v1118 = vmax.f32 %v1102, 0.0
    %v1119 = vmax.f32 %v1103, 0.0
    %v1120 = vmax.f32 %v1104, 0.0
    %v1121 = vmax.f32 %v1105, 0.0
    %v1122 = vmax.f32 %v1106, 0.0
    %v1123 = vmax.f32 %v1107, 0.0
    %v1124 = vmax.f32 %v1108, 0.0
    %v1125 = vmax.f32 %v1109, 0.0
    %v1126 = vld [vmem:[%s7] sm:$0xff]
    %v1127 = vld [vmem:[%s7 + $0x8] sm:$0xff]
    %v1128 = vld [vmem:[%s7 + $0x10] sm:$0xff]
    %v1129 = vld [vmem:[%s7 + $0x18] sm:$0xff]
    %v1130 = vld [vmem:[%s7 + $0x20] sm:$0xff]
    %v1131 = vld [vmem:[%s7 + $0x28] sm:$0xff]
    %v1132 = vld [vmem:[%s7 + $0x30] sm:$0xff]
    %v1133 = vld [vmem:[%s7 + $0x38] sm:$0xff]
    %v1134 = vld [vmem:[%s7 + $0x40] sm:$0xff]
    %v1135 = vld [vmem:[%s7 + $0x48] sm:$0xff]
    %v1136 = vld [vmem:[%s7 + $0x50] sm:$0xff]
    %v1137 = vld [vmem:[%s7 + $0x58] sm:$0xff]
    %v1138 = vld [vmem:[%s7 + $0x60] sm:$0xff]
    %v1139 = vld [vmem:[%s7 + $0x68] sm:$0xff]
    %v1140 = vld [vmem:[%s7 + $0x70] sm:$0xff]
    %v1141 = vld [vmem:[%s7 + $0x78] sm:$0xff]
    %1143 = vset.pattern.permute.xlu0 0
    %1144 = vperm.xlu0 %1143, %v1110
    %v1145 = vpop.permute.xlu0 %1144
    %1148 = vset.pattern.permute.xlu0 0
    %1149 = vperm.xlu0 %1148, %v1111
    %v1150 = vpop.permute.xlu0 %1149
    %1153 = vset.pattern.permute.xlu0 0
    %1154 = vperm.xlu0 %1153, %v1112
    %v1155 = vpop.permute.xlu0 %1154
    %1158 = vset.pattern.permute.xlu0 0
    %1159 = vperm.xlu0 %1158, %v1113
    %v1160 = vpop.permute.xlu0 %1159
    %1163 = vset.pattern.permute.xlu0 0
    %1164 = vperm.xlu0 %1163, %v1114
    %v1165 = vpop.permute.xlu0 %1164
    %1168 = vset.pattern.permute.xlu0 0
    %1169 = vperm.xlu0 %1168, %v1115
    %v1170 = vpop.permute.xlu0 %1169
    %1173 = vset.pattern.permute.xlu0 0
    %1174 = vperm.xlu0 %1173, %v1116
    %v1175 = vpop.permute.xlu0 %1174
    %1178 = vset.pattern.permute.xlu0 0
    %1179 = vperm.xlu0 %1178, %v1117
    %v1180 = vpop.permute.xlu0 %1179
    %1183 = vset.pattern.permute.xlu0 0
    %1184 = vperm.xlu0 %1183, %v1118
    %v1185 = vpop.permute.xlu0 %1184
    %1188 = vset.pattern.permute.xlu0 0
    %1189 = vperm.xlu0 %1188, %v1119
    %v1190 = vpop.permute.xlu0 %1189
    %1193 = vset.pattern.permute.xlu0 0
    %1194 = vperm.xlu0 %1193, %v1120
    %v1195 = vpop.permute.xlu0 %1194
    %1198 = vset.pattern.permute.xlu0 0
    %1199 = vperm.xlu0 %1198, %v1121
    %v1200 = vpop.permute.xlu0 %1199
    %1203 = vset.pattern.permute.xlu0 0
    %1204 = vperm.xlu0 %1203, %v1122
    %v1205 = vpop.permute.xlu0 %1204
    %1208 = vset.pattern.permute.xlu0 0
    %1209 = vperm.xlu0 %1208, %v1123
    %v1210 = vpop.permute.xlu0 %1209
    %1213 = vset.pattern.permute.xlu0 0
    %1214 = vperm.xlu0 %1213, %v1124
    %v1215 = vpop.permute.xlu0 %1214
    %1218 = vset.pattern.permute.xlu0 0
    %1219 = vperm.xlu0 %1218, %v1125
    %v1220 = vpop.permute.xlu0 %1219
    %v1222 = vmul.f32 %v1145, %v1126
    %v1223 = vmul.f32 %v1150, %v1127
    %v1224 = vmul.f32 %v1155, %v1128
    %v1225 = vmul.f32 %v1160, %v1129
    %v1226 = vmul.f32 %v1165, %v1130
    %v1227 = vmul.f32 %v1170, %v1131
    %v1228 = vmul.f32 %v1175, %v1132
    %v1229 = vmul.f32 %v1180, %v1133
    %v1230 = vmul.f32 %v1185, %v1134
    %v1231 = vmul.f32 %v1190, %v1135
    %v1232 = vmul.f32 %v1195, %v1136
    %v1233 = vmul.f32 %v1200, %v1137
    %v1234 = vmul.f32 %v1205, %v1138
    %v1235 = vmul.f32 %v1210, %v1139
    %v1236 = vmul.f32 %v1215, %v1140
    %v1237 = vmul.f32 %v1220, %v1141
    %vm1238 = vcmask 64512
    %v1239 = vsel %vm1238, %v1222, 0.0
    %v1240 = vsel %vm1238, %v1223, 0.0
    %v1241 = vadd.f32 %v1239, %v1240
    %v1242 = vsel %vm1238, %v1224, 0.0
    %v1243 = vadd.f32 %v1241, %v1242
    %v1244 = vsel %vm1238, %v1225, 0.0
    %v1245 = vadd.f32 %v1243, %v1244
    %v1246 = vsel %vm1238, %v1226, 0.0
    %v1247 = vadd.f32 %v1245, %v1246
    %v1248 = vsel %vm1238, %v1227, 0.0
    %v1249 = vadd.f32 %v1247, %v1248
    %v1250 = vsel %vm1238, %v1228, 0.0
    %v1251 = vadd.f32 %v1249, %v1250
    %v1252 = vsel %vm1238, %v1229, 0.0
    %v1253 = vadd.f32 %v1251, %v1252
    %v1254 = vsel %vm1238, %v1230, 0.0
    %v1255 = vadd.f32 %v1253, %v1254
    %v1256 = vsel %vm1238, %v1231, 0.0
    %v1257 = vadd.f32 %v1255, %v1256
    %v1258 = vsel %vm1238, %v1232, 0.0
    %v1259 = vadd.f32 %v1257, %v1258
    %v1260 = vsel %vm1238, %v1233, 0.0
    %v1261 = vadd.f32 %v1259, %v1260
    %v1262 = vsel %vm1238, %v1234, 0.0
    %v1263 = vadd.f32 %v1261, %v1262
    %v1264 = vsel %vm1238, %v1235, 0.0
    %v1265 = vadd.f32 %v1263, %v1264
    %v1266 = vsel %vm1238, %v1236, 0.0
    %v1267 = vadd.f32 %v1265, %v1266
    %v1268 = vsel %vm1238, %v1237, 0.0
    %v1269 = vadd.f32 %v1267, %v1268
    %v1270 = vrot.slane %v1269, 4
    %v1271 = vadd.f32 %v1269, %v1270
    %v1272 = vrot.slane %v1271, 2
    %v1273 = vadd.f32 %v1271, %v1272
    %v1274 = vrot.slane %v1273, 1
    %v1275 = vadd.f32 %v1273, %v1274
    %v1276 = vld [vmem:[%s8] sm:$0x1]
    %v1277 = vadd.f32 %v1275, %v1276
    %v1278 = vld [vmem:[%s9] sm:$0x1]
    %v1279 = vmul.f32 %v1277, %v1278
    %vm1280 = vcmask 57344
    %v1281 = vsel %vm1280, %v1279, 0.0
    %1282 = vadd.xlane.f32.xlu0 %v1281
    %v1283 = vpop.xlane.xlu0 %1282
    %v1284 = vld [vmem:[#allocation3] sm:$0x1]
    %v1285 = vadd.f32 %v1283, %v1284
    %vm1286 = vcmask 0
    %1287 = vst.msk [vmem:[#allocation4] sm:$0x1] %vm1286, %v1285
    // Predicated region
    $region46: #{tpu_custom_call.1} parent=1 // pred_check
      _
    $region47: #{tpu_custom_call.1} parent=1 // pred_check_branch
      %1289 = sbr.rel (0) target = $region49
    $region48: #{tpu_custom_call.1} parent=1 // pred_region
      %s1291 = ssub.s32 16, 16
      %1292 = vsyncadd [#allocation5], %s1291
      %s1294 = sshll.u32 [#allocation4], 4
      %s1295 = int_to_ptr.vmem [resolvable:$true] %s1294
      %1297 = dma.vmem_to_hbm [thread:$0]  %s1295, 16, %s11, [#allocation5]
    $region49: #{tpu_custom_call.1} parent=1 // pred_fallthru
      _
    // Predicated region
    $region50: #{tpu_custom_call.1} parent=1 // pred_check
      _
    $region51: #{tpu_custom_call.1} parent=1 // pred_check_branch
      %1299 = sbr.rel (0) target = $region53
    $region52: #{tpu_custom_call.1} parent=1 // pred_region
      %1300 = dma.done [#allocation5], 16
    $region53: #{tpu_custom_call.1} parent=1 // pred_fallthru
      _
    %1301 = vsyncpa [#allocation5], 1

</llo_original>
